<compile_context>
chip_gen: v7x
topology: tpu7x:2x2x1
jax: 0.10.0
libtpu: 0.0.40
codegen_flags: <defaults>
</compile_context>

<pallas_src>
import functools

import jax
import jax.numpy as jnp
from jax.experimental import pallas as pl
from jax.experimental.pallas import tpu as pltpu


def _iln2d_kernel(x_ref, gain_ref, bias_ref, o_ref, *, eps, n):
    # x_ref block: (1, TH, C*W) -- lane-dense, reduction axis last.
    x = x_ref[...].astype(jnp.float32)                  # (1, TH, CW)

    inv_n = 1.0 / n
    # Note: torch.std with n == 1 would give NaN; we guard the Python-level
    # division so trace doesn't blow up for the degenerate C*W == 1 case.
    inv_nm1 = 1.0 / max(n - 1, 1)

    # mean over (C, W)  -> one contiguous last-dim reduce per H row
    mean = jnp.sum(x, axis=-1, keepdims=True) * inv_n   # (1, TH, 1)
    diff = x - mean

    # unbiased variance / std (two-pass form: no cancellation issues)
    var = jnp.sum(diff * diff, axis=-1, keepdims=True) * inv_nm1  # (1, TH, 1)
    std = jnp.sqrt(var)

    # PyTorch module: ins_std = (std + eps).pow(0.5); divide by it.
    # Exact per-row reciprocal (tiny tensor), broadcast-multiplied over the
    # full tile instead of a full-tile divide.
    denom = jnp.sqrt(std + eps)                         # (1, TH, 1)
    inv = pl.reciprocal(denom, approx=False)            # (1, TH, 1)

    gain = gain_ref[...].astype(jnp.float32)            # (1, CW)
    bias = bias_ref[...].astype(jnp.float32)            # (1, CW)

    o_ref[...] = ((diff * inv) * gain + bias).astype(o_ref.dtype)


def _choose_row_tile(H, CW, itemsize, budget_bytes=4 << 20):
    """Largest H-tile that divides H, satisfies the (8,128) rule, fits budget."""
    max_rows = max(1, budget_bytes // max(1, CW * itemsize))
    if H <= max_rows:
        return H                      # full H -> always a legal block dim
    th = (max_rows // 8) * 8
    while th >= 8:
        if H % th == 0:
            return th                 # multiple of 8 that divides H
        th -= 8
    return H                          # fallback: whole H (legal, maybe big)


def instant_layer_norm_2d(x, gain, bias, eps=1e-5):
    """x: (B, C, H, W) NCHW. gain/bias: (1, C, 1, 1). Returns NCHW."""
    B, C, H, W = x.shape
    CW = C * W

    # Lane-dense view: (B, H, C*W). Layout plumbing done outside the kernel.
    x_r = jnp.transpose(x, (0, 2, 1, 3)).reshape(B, H, CW)

    # Pre-expand per-channel affine params to one (1, C*W) row (done once).
    gain_row = jnp.broadcast_to(gain.reshape(1, C, 1), (1, C, W)).reshape(1, CW)
    bias_row = jnp.broadcast_to(bias.reshape(1, C, 1), (1, C, W)).reshape(1, CW)

    TH = _choose_row_tile(H, CW, jnp.dtype(x.dtype).itemsize)
    grid = (B, H // TH)

    kernel = functools.partial(_iln2d_kernel, eps=eps, n=CW)

    out_r = pl.pallas_call(
        kernel,
        out_shape=jax.ShapeDtypeStruct((B, H, CW), x.dtype),
        grid_spec=pltpu.PrefetchScalarGridSpec(
            num_scalar_prefetch=0,
            grid=grid,
            in_specs=[
                pl.BlockSpec((1, TH, CW), lambda b, h: (b, h, 0)),
                pl.BlockSpec((1, CW), lambda b, h: (0, 0)),
                pl.BlockSpec((1, CW), lambda b, h: (0, 0)),
            ],
            out_specs=pl.BlockSpec((1, TH, CW), lambda b, h: (b, h, 0)),
        ),
        compiler_params=pltpu.CompilerParams(
            dimension_semantics=("parallel", "parallel"),
            vmem_limit_bytes=64 << 20,
        ),
    )(x_r, gain_row, bias_row)

    # Back to NCHW outside the pallas_call.
    return out_r.reshape(B, H, C, W).transpose(0, 2, 1, 3)


def _reference(x, gain, bias, eps=1e-5):
    mean = jnp.mean(x, axis=(1, 3), keepdims=True)
    n = x.shape[1] * x.shape[3]
    var = jnp.sum((x - mean) ** 2, axis=(1, 3), keepdims=True) / (n - 1)
    std = jnp.sqrt(var)
    denom = jnp.sqrt(std + eps)
    return (x - mean) / denom * gain + bias


if __name__ == "__main__":
    B, C, H, W = 2, 4, 16, 16
    key = jax.random.PRNGKey(0)
    x = jax.random.normal(key, (B, C, H, W), dtype=jnp.float32)

    # nn.Parameter(torch.ones/zeros(1, C, 1, 1)) init
    gain = jnp.ones((1, C, 1, 1), dtype=jnp.float32)
    bias = jnp.zeros((1, C, 1, 1), dtype=jnp.float32)

    out = instant_layer_norm_2d(x, gain, bias, eps=1e-5)
    out = jax.block_until_ready(out)

    ref = _reference(x, gain, bias, eps=1e-5)
    assert out.shape == (B, C, H, W)
    assert jnp.allclose(out, ref, atol=1e-5, rtol=1e-5), "mismatch vs reference"

    print("KERNEL_OK")
</pallas_src>

<mosaic_0001>
module attributes {stable_mosaic.version = 11 : i64} {
  func.func @_iln2d_kernel(%arg0: i32, %arg1: i32, %arg2: memref<1x16x64xf32, #tpu.memory_space<vmem>>, %arg3: memref<1x64xf32, #tpu.memory_space<vmem>>, %arg4: memref<1x64xf32, #tpu.memory_space<vmem>>, %arg5: memref<1x16x64xf32, #tpu.memory_space<vmem>>) attributes {dimension_semantics = [#tpu.dimension_semantics<parallel>, #tpu.dimension_semantics<parallel>], iteration_bounds = array<i64: 2, 1>, scalar_prefetch = 0 : i64, scratch_operands = 0 : i64, tpu.core_type = #tpu.core_type<tc>, window_params = [{transform_indices = @transform_0, window_bounds = array<i64: 1, 16, 64>}, {pipeline_mode = #tpu.pipeline_mode<synchronous>, transform_indices = @transform_1, window_bounds = array<i64: 1, 64>}, {pipeline_mode = #tpu.pipeline_mode<synchronous>, transform_indices = @transform_2, window_bounds = array<i64: 1, 64>}, {transform_indices = @transform_3, window_bounds = array<i64: 1, 16, 64>}]} {
    %c0 = arith.constant 0 : index
    %c0_0 = arith.constant 0 : index
    %c0_1 = arith.constant 0 : index
    %0 = vector.load %arg2[%c0, %c0_0, %c0_1] : memref<1x16x64xf32, #tpu.memory_space<vmem>>, vector<1x16x64xf32>
    %cst = arith.constant dense<0.000000e+00> : vector<1x16xf32>
    %1 = vector.multi_reduction <add>, %0, %cst [2] : vector<1x16x64xf32> to vector<1x16xf32>
    %2 = vector.shape_cast %1 : vector<1x16xf32> to vector<1x16x1xf32>
    %cst_2 = arith.constant 1.562500e-02 : f32
    %3 = vector.broadcast %cst_2 : f32 to vector<1x16x1xf32>
    %4 = arith.mulf %2, %3 : vector<1x16x1xf32>
    %5 = vector.broadcast %4 : vector<1x16x1xf32> to vector<1x16x64xf32>
    %6 = arith.subf %0, %5 : vector<1x16x64xf32>
    %7 = arith.mulf %6, %6 : vector<1x16x64xf32>
    %cst_3 = arith.constant dense<0.000000e+00> : vector<1x16xf32>
    %8 = vector.multi_reduction <add>, %7, %cst_3 [2] : vector<1x16x64xf32> to vector<1x16xf32>
    %9 = vector.shape_cast %8 : vector<1x16xf32> to vector<1x16x1xf32>
    %cst_4 = arith.constant 0.0158730168 : f32
    %10 = vector.broadcast %cst_4 : f32 to vector<1x16x1xf32>
    %11 = arith.mulf %9, %10 : vector<1x16x1xf32>
    %12 = math.sqrt %11 : vector<1x16x1xf32>
    %cst_5 = arith.constant 9.99999974E-6 : f32
    %13 = vector.broadcast %cst_5 : f32 to vector<1x16x1xf32>
    %14 = arith.addf %12, %13 : vector<1x16x1xf32>
    %15 = math.sqrt %14 : vector<1x16x1xf32>
    %16 = tpu.reciprocal %15 : vector<1x16x1xf32> -> vector<1x16x1xf32>
    %c0_6 = arith.constant 0 : index
    %c0_7 = arith.constant 0 : index
    %17 = vector.load %arg3[%c0_6, %c0_7] : memref<1x64xf32, #tpu.memory_space<vmem>>, vector<1x64xf32>
    %c0_8 = arith.constant 0 : index
    %c0_9 = arith.constant 0 : index
    %18 = vector.load %arg4[%c0_8, %c0_9] : memref<1x64xf32, #tpu.memory_space<vmem>>, vector<1x64xf32>
    %19 = vector.broadcast %16 : vector<1x16x1xf32> to vector<1x16x64xf32>
    %20 = arith.mulf %6, %19 : vector<1x16x64xf32>
    %21 = vector.shape_cast %17 : vector<1x64xf32> to vector<1x1x64xf32>
    %22 = vector.broadcast %21 : vector<1x1x64xf32> to vector<1x16x64xf32>
    %23 = arith.mulf %20, %22 : vector<1x16x64xf32>
    %24 = vector.shape_cast %18 : vector<1x64xf32> to vector<1x1x64xf32>
    %25 = vector.broadcast %24 : vector<1x1x64xf32> to vector<1x16x64xf32>
    %26 = arith.addf %23, %25 : vector<1x16x64xf32>
    %c0_10 = arith.constant 0 : index
    %c0_11 = arith.constant 0 : index
    %c0_12 = arith.constant 0 : index
    %27 = vector.load %arg5[%c0_10, %c0_11, %c0_12] : memref<1x16x64xf32, #tpu.memory_space<vmem>>, vector<1x16x64xf32>
    tpu.vector_store %arg5[%c0_10, %c0_11, %c0_12], %26 {strides = array<i32>} : memref<1x16x64xf32, #tpu.memory_space<vmem>>, vector<1x16x64xf32>,
    return
  }
  func.func @transform_0(%arg0: i32, %arg1: i32) -> (i32, i32, i32) {
    %c0_i32 = arith.constant 0 : i32
    %c0_i32_0 = arith.constant 0 : i32
    return %arg0, %arg1, %c0_i32 : i32, i32, i32
  }
  func.func @transform_1(%arg0: i32, %arg1: i32) -> (i32, i32) {
    %c0_i32 = arith.constant 0 : i32
    %c0_i32_0 = arith.constant 0 : i32
    %c0_i32_1 = arith.constant 0 : i32
    return %c0_i32, %c0_i32_0 : i32, i32
  }
  func.func @transform_2(%arg0: i32, %arg1: i32) -> (i32, i32) {
    %c0_i32 = arith.constant 0 : i32
    %c0_i32_0 = arith.constant 0 : i32
    %c0_i32_1 = arith.constant 0 : i32
    return %c0_i32, %c0_i32_0 : i32, i32
  }
  func.func @transform_3(%arg0: i32, %arg1: i32) -> (i32, i32, i32) {
    %c0_i32 = arith.constant 0 : i32
    %c0_i32_0 = arith.constant 0 : i32
    return %arg0, %arg1, %c0_i32 : i32, i32, i32
  }
}

</mosaic_0001>

<llo_original>
// kernel: tpu_custom_call.1
$region0: #{tpu_custom_call.1}
  #allocation0 [shape = 'u32[]', space=smem, size = 0x4, offset = 0x4, fixed_abs, tag = 'smem constant byte address 0x4 - core index']
  #allocation1 [shape = 'u32[144,128]{1,0:T(1,128)}', space=vmem, size = 0x12000, scoped, tag = 'internal scratch']
  %s0 = inlined_call_operand.hbm [shape: f32[2,16,64], index: 0, kind: input, shape index: {}]
  %s1 = inlined_call_operand.hbm [shape: f32[1,64], index: 1, kind: input, shape index: {}]
  %s2 = inlined_call_operand.hbm [shape: f32[1,64], index: 2, kind: input, shape index: {}]
  %s3 = inlined_call_operand.hbm [shape: f32[2,16,64], index: 3, kind: output, shape index: {}]
  %s4 = sld [smem:[#allocation0]]
  $region57: #{tpu_custom_call.1} parent=0
    _
  %s6 = ssub.s32 1, %s4
  %s7 = scalar_select 0, %s6, %s4
  $region1: #{tpu_custom_call.1} parent=0
    #allocation2 [shape = 'u8[16384]{0}', space=vmem, size = 0x4000, scoped, tag = 'input window, operand 0']
    #allocation3 [shape = 's32[2]{0}', space=sflag, size = 0x8, scoped, tag = 'scoped memory for tpu_custom_call.1']
    #allocation4 [shape = 's32[2]{0}', space=sflag, size = 0x8, scoped, tag = 'scoped memory for tpu_custom_call.1']
    #allocation5 [shape = 'u8[512]{0}', space=vmem, size = 0x400, scoped, tag = 'input window, operand 1, single buffered']
    #allocation6 [shape = 's32[1]{0}', space=sflag, size = 0x4, scoped, tag = 'scoped memory for tpu_custom_call.1']
    #allocation7 [shape = 'u8[512]{0}', space=vmem, size = 0x400, scoped, tag = 'input window, operand 2, single buffered']
    #allocation8 [shape = 'u8[16384]{0}', space=vmem, size = 0x4000, scoped, tag = 'output window, operand 0']
    %8 = vsyncpa [#allocation3], 0
    %s9 = scalar_lea.sflag [#allocation3], 1
    %10 = vsyncpa %s9, 0
    %11 = vsyncpa [#allocation6], 0
    %12 = vsyncpa [#allocation4], 0
    %s13 = scalar_lea.sflag [#allocation4], 1
    %14 = vsyncpa %s13, 0
    loop: start=0, step=1, limit=4
    $region2: #{tpu_custom_call.1} parent=1 // loop_pre_header
      _
    $region3: #{tpu_custom_call.1} parent=1 // loop_header
      %s16 = sphi 0, %s20
      %p17 = scmp.ge.s32.totalorder %s16, 4
      %s23 = sphi 0, %s35
      %s24 = sphi 0, %s31
      %s25 = sphi 0, %s23
      %s26 = sphi 0, %s24
      %s27 = sphi 0, %s25
      %s28 = sphi 0, %s26
      %s40 = sphi 0, %s42
      %s43 = sphi 0, %s40
      %s44 = sphi 0, %s43
      %s60 = sphi 0, %s44
      %s64 = sphi 0, %s64
      %s66 = sphi 0, %s64
      %s67 = sphi 0, %s66
      %s81 = sphi 0, %s67
      %s85 = sphi 0, %s85
      %s87 = sphi 0, %s85
      %s88 = sphi 0, %s87
      %s102 = sphi 0, %s88
      %s110 = sphi 0, %s112
      %s113 = sphi 0, %s110
      %s114 = sphi 0, %s113
      %s130 = sphi 0, %s114
    $region4: #{tpu_custom_call.1} parent=1 // loop_header_branch
      %19 = sbr.rel (%p17) target = $region8
    $region5: #{tpu_custom_call.1} parent=1 // loop_body
      %s21 = ssub.s32 %s16, 1
      %s22 = ssub.s32 %s16, 2
      %s29 = sadd.s32 1, %s24
      %p30 = scmp.ge.s32.totalorder %s29, 1
      %s31 = scalar_select %p30, 0, %s29
      %s32 = sadd.s32 1, %s23
      %s33 = scalar_select %p30, %s32, %s23
      %p34 = scmp.ge.s32.totalorder %s33, 2
      %s35 = scalar_select %p34, 0, %s33
      %s36 = ssub.s32 %s23, %s35
      %s37 = ssub.s32 %s24, %s31
      %s38 = sor.u32 %s36, %s37
      %p39 = scmp.eq.s32.totalorder %s38, 0
      %s41 = sadd.s32 %s40, 1
      %s42 = scalar_select %p39, %s40, %s41
      %p45 = pneg %p39
      %p46 = scmp.eq.s32.totalorder %s16, 1
      %p47 = por %p45, %p46
      %p48 = scmp.ne.s32.totalorder %s40, %s43
      %p49 = scmp.eq.s32.totalorder %s16, 0
      %p50 = por %p48, %p49
      %p51 = scmp.ne.s32.totalorder %s40, %s43
      %p52 = scmp.eq.s32.totalorder %s21, 1
      %p53 = por %p51, %p52
      %p54 = scmp.ne.s32.totalorder %s43, %s44
      %p55 = scmp.eq.s32.totalorder %s21, 0
      %p56 = por %p54, %p55
      %p57 = scmp.ne.s32.totalorder %s43, %s44
      %p58 = scmp.eq.s32.totalorder %s22, 1
      %p59 = por %p57, %p58
      %p61 = scmp.ne.s32.totalorder %s44, %s60
      %p62 = scmp.eq.s32.totalorder %s22, 0
      %p63 = por %p61, %p62
      %s65 = sadd.s32 %s64, 1
      %p68 = scmp.eq.s32.totalorder %s16, 1
      %p69 = scmp.ne.s32.totalorder %s64, %s66
      %p70 = scmp.eq.s32.totalorder %s16, 0
      %p71 = por %p69, %p70
      %p72 = scmp.ne.s32.totalorder %s64, %s66
      %p73 = scmp.eq.s32.totalorder %s21, 1
      %p74 = por %p72, %p73
      %p75 = scmp.ne.s32.totalorder %s66, %s67
      %p76 = scmp.eq.s32.totalorder %s21, 0
      %p77 = por %p75, %p76
      %p78 = scmp.ne.s32.totalorder %s66, %s67
      %p79 = scmp.eq.s32.totalorder %s22, 1
      %p80 = por %p78, %p79
      %p82 = scmp.ne.s32.totalorder %s67, %s81
      %p83 = scmp.eq.s32.totalorder %s22, 0
      %p84 = por %p82, %p83
      %s86 = sadd.s32 %s85, 1
      %p89 = scmp.eq.s32.totalorder %s16, 1
      %p90 = scmp.ne.s32.totalorder %s85, %s87
      %p91 = scmp.eq.s32.totalorder %s16, 0
      %p92 = por %p90, %p91
      %p93 = scmp.ne.s32.totalorder %s85, %s87
      %p94 = scmp.eq.s32.totalorder %s21, 1
      %p95 = por %p93, %p94
      %p96 = scmp.ne.s32.totalorder %s87, %s88
      %p97 = scmp.eq.s32.totalorder %s21, 0
      %p98 = por %p96, %p97
      %p99 = scmp.ne.s32.totalorder %s87, %s88
      %p100 = scmp.eq.s32.totalorder %s22, 1
      %p101 = por %p99, %p100
      %p103 = scmp.ne.s32.totalorder %s88, %s102
      %p104 = scmp.eq.s32.totalorder %s22, 0
      %p105 = por %p103, %p104
      %s106 = ssub.s32 %s23, %s35
      %s107 = ssub.s32 %s24, %s31
      %s108 = sor.u32 %s106, %s107
      %p109 = scmp.eq.s32.totalorder %s108, 0
      %s111 = sadd.s32 %s110, 1
      %s112 = scalar_select %p109, %s110, %s111
      %p115 = pneg %p109
      %p116 = scmp.eq.s32.totalorder %s16, 1
      %p117 = por %p115, %p116
      %p118 = scmp.ne.s32.totalorder %s110, %s113
      %p119 = scmp.eq.s32.totalorder %s16, 0
      %p120 = por %p118, %p119
      %p121 = scmp.ne.s32.totalorder %s110, %s113
      %p122 = scmp.eq.s32.totalorder %s21, 1
      %p123 = por %p121, %p122
      %p124 = scmp.ne.s32.totalorder %s113, %s114
      %p125 = scmp.eq.s32.totalorder %s21, 0
      %p126 = por %p124, %p125
      %p127 = scmp.ne.s32.totalorder %s113, %s114
      %p128 = scmp.eq.s32.totalorder %s22, 1
      %p129 = por %p127, %p128
      %p131 = scmp.ne.s32.totalorder %s114, %s130
      %p132 = scmp.eq.s32.totalorder %s22, 0
      %p133 = por %p131, %p132
      %p134 = scmp.le.s32.totalorder 1, %s16
      %p135 = scmp.lt.s32.totalorder %s16, 3
      %p136 = pnand %p134, %p135
      %p137 = pneg %p136
      // Predicated region
      $region9: #{tpu_custom_call.1} parent=5 // pred_check
        _
      $region10: #{tpu_custom_call.1} parent=5 // pred_check_branch
        %139 = sbr.rel (%p136) target = $region12
      $region11: #{tpu_custom_call.1} parent=5 // pred_region
        %s140 = ssub.s32 %s16, 1
        // Predicated region
        $region13: #{tpu_custom_call.1} parent=11 // pred_check
          %p141 = pneg %p77
        $region14: #{tpu_custom_call.1} parent=11 // pred_check_branch
          %143 = sbr.rel (%p141) target = $region16
        $region15: #{tpu_custom_call.1} parent=11 // pred_region
          %s145 = ssub.s32 16, 16
          %146 = vsyncadd [#allocation6], %s145
          %s148 = sshll.u32 [#allocation5], 4
          %s149 = int_to_ptr.vmem [resolvable:$true] %s148
          %151 = dma.hbm_to_vmem [thread:$0]  %s1, 16, %s149, [#allocation6]
        $region16: #{tpu_custom_call.1} parent=11 // pred_fallthru
          _
        // Predicated region
        $region17: #{tpu_custom_call.1} parent=11 // pred_check
          %p152 = pneg %p98
        $region18: #{tpu_custom_call.1} parent=11 // pred_check_branch
          %154 = sbr.rel (%p152) target = $region20
        $region19: #{tpu_custom_call.1} parent=11 // pred_region
          %s156 = ssub.s32 16, 16
          %157 = vsyncadd [#allocation6], %s156
          %s159 = sshll.u32 [#allocation7], 4
          %s160 = int_to_ptr.vmem [resolvable:$true] %s159
          %162 = dma.hbm_to_vmem [thread:$0]  %s2, 16, %s160, [#allocation6]
        $region20: #{tpu_custom_call.1} parent=11 // pred_fallthru
          _
      $region12: #{tpu_custom_call.1} parent=5 // pred_fallthru
        _
      %p163 = scmp.lt.s32.totalorder %s16, 2
      // Predicated region
      $region21: #{tpu_custom_call.1} parent=5 // pred_check
        %p164 = pneg %p163
      $region22: #{tpu_custom_call.1} parent=5 // pred_check_branch
        %166 = sbr.rel (%p164) target = $region24
      $region23: #{tpu_custom_call.1} parent=5 // pred_region
        // Predicated region
        $region25: #{tpu_custom_call.1} parent=23 // pred_check
          %p167 = pneg %p50
        $region26: #{tpu_custom_call.1} parent=23 // pred_check_branch
          %169 = sbr.rel (%p167) target = $region28
        $region27: #{tpu_custom_call.1} parent=23 // pred_region
          %s170 = sand.u32 %s40, 1
          %s171 = scalar_lea.sflag [#allocation3], %s170
          %s172 = sand.u32 %s40, 1
          %s173 = smul.addr %s172, 16
          %s174 = scalar_lea.vmem [#allocation2], %s173
          %s175 = smul.u32 2, %s24
          %s177 = ssub.s32 256, 256
          %178 = vsyncadd %s171, %s177
          %s179 = smul.addr %s23, 2
          %s180 = sadd.s32 %s175, %s179
          %s181 = smul.addr %s180, 128
          %s182 = scalar_lea.hbm %s0, %s181
          %s183 = sshll.u32 %s174, 4
          %s184 = int_to_ptr.vmem [resolvable:$true] %s183
          %189 = dma.hbm_to_vmem [thread:$0]  %s182, 256, %s184, %s171, 128, 128, 8
        $region28: #{tpu_custom_call.1} parent=23 // pred_fallthru
          _
      $region24: #{tpu_custom_call.1} parent=5 // pred_fallthru
        _
      %p190 = scmp.le.s32.totalorder 1, %s16
      %p191 = scmp.lt.s32.totalorder %s16, 3
      %p192 = pnand %p190, %p191
      %p193 = pneg %p192
      // Predicated region
      $region29: #{tpu_custom_call.1} parent=5 // pred_check
        _
      $region30: #{tpu_custom_call.1} parent=5 // pred_check_branch
        %195 = sbr.rel (%p192) target = $region32
      $region31: #{tpu_custom_call.1} parent=5 // pred_region
        %s196 = ssub.s32 %s16, 1
        %s197 = sand.u32 %s43, 1
        %s198 = scalar_lea.sflag [#allocation3], %s197
        %s199 = sand.u32 %s43, 1
        %s200 = smul.addr %s199, 16
        %s201 = scalar_lea.vmem [#allocation2], %s200
        // Predicated region
        $region33: #{tpu_custom_call.1} parent=31 // pred_check
          %p202 = pneg %p56
        $region34: #{tpu_custom_call.1} parent=31 // pred_check_branch
          %204 = sbr.rel (%p202) target = $region36
        $region35: #{tpu_custom_call.1} parent=31 // pred_region
          %205 = dma.done %s198, 256
        $region36: #{tpu_custom_call.1} parent=31 // pred_fallthru
          _
        // Predicated region
        $region37: #{tpu_custom_call.1} parent=31 // pred_check
          %p206 = pneg %p77
        $region38: #{tpu_custom_call.1} parent=31 // pred_check_branch
          %208 = sbr.rel (%p206) target = $region40
        $region39: #{tpu_custom_call.1} parent=31 // pred_region
          %209 = dma.done [#allocation6], 16
        $region40: #{tpu_custom_call.1} parent=31 // pred_fallthru
          _
        // Predicated region
        $region41: #{tpu_custom_call.1} parent=31 // pred_check
          %p210 = pneg %p98
        $region42: #{tpu_custom_call.1} parent=31 // pred_check_branch
          %212 = sbr.rel (%p210) target = $region44
        $region43: #{tpu_custom_call.1} parent=31 // pred_region
          %213 = dma.done [#allocation6], 16
        $region44: #{tpu_custom_call.1} parent=31 // pred_fallthru
          _
        %s214 = sand.u32 %s43, 1
        %s215 = scalar_lea.sflag [#allocation3], %s214
        %s216 = sand.u32 %s43, 1
        %s217 = smul.addr %s216, 16
        %s218 = scalar_lea.vmem [#allocation2], %s217
        %p219 = pneg %p56
        %p220 = pneg %p53
        %p221 = pneg %p77
        %p222 = pneg %p74
        %p223 = pneg %p98
        %p224 = pneg %p95
        %p225 = pneg %p126
        %p226 = pneg %p123
        %s227 = sand.u32 %s113, 1
        %s228 = scalar_lea.sflag [#allocation4], %s227
        %s229 = sand.u32 %s113, 1
        %s230 = smul.addr %s229, 16
        %s231 = scalar_lea.vmem [#allocation8], %s230
        %s232 = smul.u32 2, %s26
        %s233 = smul.u32 2, %s26
        %v234 = vld [vmem:[%s201] sm:$0xff]
        %v235 = vld [vmem:[%s201 + $0x8] sm:$0xff]
        %vm236 = vcmask 523264
        %v237 = vsel %vm236, %v234, 0.0
        %238 = vadd.xlane.f32.xlu0 %v237
        %v239 = vpop.xlane.xlu0 %238
        %v240 = vsel %vm236, %v235, 0.0
        %241 = vadd.xlane.f32.xlu0 %v240
        %v242 = vpop.xlane.xlu0 %241
        %v243 = vmul.f32 %v239, 0.015625
        %v244 = vmul.f32 %v242, 0.015625
        %v245 = vsub.f32 %v234, %v243
        %v246 = vsub.f32 %v235, %v244
        %v247 = vmul.f32 %v245, %v245
        %v248 = vmul.f32 %v246, %v246
        %v249 = vsel %vm236, %v247, 0.0
        %250 = vadd.xlane.f32.xlu0 %v249
        %v251 = vpop.xlane.xlu0 %250
        %v252 = vsel %vm236, %v248, 0.0
        %253 = vadd.xlane.f32.xlu0 %v252
        %v254 = vpop.xlane.xlu0 %253
        %v255 = vmul.f32 %v251, 0.015873017
        %v256 = vmul.f32 %v254, 0.015873017
        %v257 = vrsqrt.pop %v255
        %v258 = vmul.f32 %v255, %v257
        %vm259 = vcmp.eq.f32.partialorder %v255, inf
        %v260 = vsel %vm259, %v255, %v258
        %vm261 = vcmp.eq.f32.partialorder %v255, 0.0
        %v262 = vand.u32 %v255, 2147483648
        %v263 = vsel %vm261, %v262, %v260
        %v264 = vrsqrt.pop %v256
        %v265 = vmul.f32 %v256, %v264
        %vm266 = vcmp.eq.f32.partialorder %v256, inf
        %v267 = vsel %vm266, %v256, %v265
        %vm268 = vcmp.eq.f32.partialorder %v256, 0.0
        %v269 = vand.u32 %v256, 2147483648
        %v270 = vsel %vm268, %v269, %v267
        %v271 = vadd.f32 %v263, 1e-05
        %v272 = vadd.f32 %v270, 1e-05
        %v273 = vrsqrt.pop %v271
        %v274 = vmul.f32 %v271, %v273
        %vm275 = vcmp.eq.f32.partialorder %v271, inf
        %v276 = vsel %vm275, %v271, %v274
        %vm277 = vcmp.eq.f32.partialorder %v271, 0.0
        %v278 = vand.u32 %v271, 2147483648
        %v279 = vsel %vm277, %v278, %v276
        %v280 = vrsqrt.pop %v272
        %v281 = vmul.f32 %v272, %v280
        %vm282 = vcmp.eq.f32.partialorder %v272, inf
        %v283 = vsel %vm282, %v272, %v281
        %vm284 = vcmp.eq.f32.partialorder %v272, 0.0
        %v285 = vand.u32 %v272, 2147483648
        %v286 = vsel %vm284, %v285, %v283
        %v287 = vrcp.pop %v279
        %v288 = vrcp.pop %v286
        %v289 = vld [vmem:[#allocation5] sm:$0x1]
        %v290 = vld [vmem:[#allocation7] sm:$0x1]
        %v291 = vmul.f32 %v245, %v287
        %v292 = vmul.f32 %v246, %v288
        %v294 = vlaneseq
        %v295 = vshrl.u32 %v294, 7
        %v296 = vsub.s32 0, %v295
        %v297 = vrot.slane %v289, %v296
        %v299 = vmul.f32 %v291, %v297
        %v300 = vmul.f32 %v292, %v297
        %v302 = vlaneseq
        %v303 = vshrl.u32 %v302, 7
        %v304 = vsub.s32 0, %v303
        %v305 = vrot.slane %v290, %v304
        %v307 = vadd.f32 %v299, %v305
        %v308 = vadd.f32 %v300, %v305
        %309 = vst.msk [vmem:[%s231] sm:$0xff] %vm236, %v307
        %310 = vst.msk [vmem:[%s231 + $0x8] sm:$0xff] %vm236, %v308
        %s311 = sand.u32 %s113, 1
        %s312 = scalar_lea.sflag [#allocation4], %s311
        %s313 = sand.u32 %s113, 1
        %s314 = smul.addr %s313, 16
        %s315 = scalar_lea.vmem [#allocation8], %s314
        // Predicated region
        $region45: #{tpu_custom_call.1} parent=31 // pred_check
          %p316 = pneg %p123
        $region46: #{tpu_custom_call.1} parent=31 // pred_check_branch
          %318 = sbr.rel (%p316) target = $region48
        $region47: #{tpu_custom_call.1} parent=31 // pred_region
          %s319 = smul.u32 2, %s26
          %s321 = ssub.s32 256, 256
          %322 = vsyncadd %s312, %s321
          %s323 = smul.addr %s25, 2
          %s324 = sadd.s32 %s319, %s323
          %s325 = smul.addr %s324, 128
          %s326 = scalar_lea.hbm %s3, %s325
          %s327 = sshll.u32 %s315, 4
          %s328 = int_to_ptr.vmem [resolvable:$true] %s327
          %333 = dma.vmem_to_hbm [thread:$0]  %s328, 256, %s326, %s312, 128, 128, 8
        $region48: #{tpu_custom_call.1} parent=31 // pred_fallthru
          _
      $region32: #{tpu_custom_call.1} parent=5 // pred_fallthru
        _
      %p334 = scmp.le.s32.totalorder 2, %s16
      // Predicated region
      $region49: #{tpu_custom_call.1} parent=5 // pred_check
        %p335 = pneg %p334
      $region50: #{tpu_custom_call.1} parent=5 // pred_check_branch
        %337 = sbr.rel (%p335) target = $region52
      $region51: #{tpu_custom_call.1} parent=5 // pred_region
        %s338 = ssub.s32 %s16, 2
        // Predicated region
        $region53: #{tpu_custom_call.1} parent=51 // pred_check
          %p339 = pneg %p129
        $region54: #{tpu_custom_call.1} parent=51 // pred_check_branch
          %341 = sbr.rel (%p339) target = $region56
        $region55: #{tpu_custom_call.1} parent=51 // pred_region
          %s342 = sand.u32 %s114, 1
          %s343 = scalar_lea.sflag [#allocation4], %s342
          %s344 = sand.u32 %s114, 1
          %s345 = smul.addr %s344, 16
          %s346 = scalar_lea.vmem [#allocation8], %s345
          %347 = dma.done %s343, 256
        $region56: #{tpu_custom_call.1} parent=51 // pred_fallthru
          _
      $region52: #{tpu_custom_call.1} parent=5 // pred_fallthru
        _
    $region6: #{tpu_custom_call.1} parent=1 // loop_footer
      %s20 = sadd.s32 1, %s16
    $region7: #{tpu_custom_call.1} parent=1 // loop_footer_branch
      %15 = sbr.rel target = $region3
    $region8: #{tpu_custom_call.1} parent=1 // loop_exit
      _
    %348 = vsyncpa [#allocation3], 1
    %s349 = scalar_lea.sflag [#allocation3], 1
    %350 = vsyncpa %s349, 1
    %351 = vsyncpa [#allocation6], 1
    %352 = vsyncpa [#allocation4], 1
    %s353 = scalar_lea.sflag [#allocation4], 1
    %354 = vsyncpa %s353, 1

</llo_original>
